<compile_context>
chip_gen: v7x
topology: tpu7x:2x2x1
jax: 0.10.0
libtpu: 0.0.40
codegen_flags: <defaults>
</compile_context>

<pallas_src>
import functools
import math

import jax
import jax.numpy as jnp
from jax.experimental import pallas as pl
from jax.experimental.pallas import tpu as pltpu


def _dilated_lstm_window_kernel(gx_ref,            # VMEM (r, B, 4H) f32: x@W_ih^T + b for this window
                                whh_ref,           # VMEM (H, 4H)    bf16: W_hh^T, resident (Buffered(1))
                                h0_hbm, c0_hbm,    # HBM  (r, B, H)  f32: initial rolled state
                                hs_ref,            # VMEM (r, B, H)  f32: per-step h_s output block
                                h_out_hbm,         # HBM  (r, B, H)  f32: final rolled h state
                                c_out_hbm,         # HBM  (r, B, H)  f32: final rolled c state
                                h_sc, c_sc,        # VMEM (r, B, H)  f32 scratch, resident across grid
                                *, r, hid, t_valid):
    w = pl.program_id(0)
    nw = pl.num_programs(0)

    # Load the (rolled) dilated state into VMEM scratch once; it stays resident
    # across all windows and is written back to HBM once at the end.
    @pl.when(w == 0)
    def _init():
        pltpu.sync_copy(h0_hbm, h_sc)
        pltpu.sync_copy(c0_hbm, c_sc)

    b = h_sc.shape[1]
    # The r steps of this window read r distinct slots, all as they were at the
    # start of the window -> one fused MXU matmul for the whole window's
    # recurrent projection (M = r*B instead of B). bf16 operands, f32 accumulate.
    h_all = h_sc[...].reshape(r * b, hid).astype(jnp.bfloat16)
    gh = jnp.dot(h_all, whh_ref[...],
                 preferred_element_type=jnp.float32).reshape(r, b, 4 * hid)

    rem = t_valid % r                      # static: only the last window can be ragged
    for j in range(r):                     # static unroll over the window
        gates = gx_ref[j] + gh[j]          # (B, 4H) f32
        # torch.nn.LSTMCell gate order: input, forget, cell(g), output.
        i_g = jax.nn.sigmoid(gates[:, 0 * hid:1 * hid])
        f_g = jax.nn.sigmoid(gates[:, 1 * hid:2 * hid])
        g_g = jnp.tanh(gates[:, 2 * hid:3 * hid])
        o_g = jax.nn.sigmoid(gates[:, 3 * hid:4 * hid])
        c_s = f_g * c_sc[j] + i_g * g_g    # f32 state update
        h_s = o_g * jnp.tanh(c_s)

        def _apply(j=j, h_s=h_s, c_s=c_s):
            h_sc[j] = h_s                           # static slot write (state rolled by t0 % r)
            c_sc[j] = c_s
            hs_ref[j] = h_s.astype(hs_ref.dtype)    # per-step output

        if rem == 0 or j < rem:
            _apply()                       # this step is valid in every window
        else:
            pl.when(w < nw - 1)(_apply)    # padded tail step: skip in the last window

    # Write the fully-updated state back to HBM once, at the end of the sequence.
    @pl.when(w == nw - 1)
    def _finalize():
        pltpu.sync_copy(h_sc, h_out_hbm)
        pltpu.sync_copy(c_sc, c_out_hbm)


def dilated_lstm_sequence(xs, state, t0, params, r):
    """Run T consecutive DilatedLSTM steps (timesteps t0 .. t0+T-1).

    Returns (h_s for every step, (h_state, c_state)) where the state is the
    fully-updated (r, B, H) dilated state after the last step."""
    h0, c0 = state
    w_ih_t, w_hh_t, bias = params
    T, B, INP = xs.shape
    r_state, b_state, H = h0.shape
    assert r_state == r and b_state == B
    # Lane/sublane alignment for unmasked vld/vst and whole-tile gate slices.
    assert B % 8 == 0 and INP % 128 == 0 and H % 128 == 0, (
        "pad B to a multiple of 8 and INP/H to multiples of 128")

    nw = pl.cdiv(T, r)          # number of dilation windows (grid size)
    t_pad = nw * r              # time padded to a whole number of windows

    # ---- (1) Hoisted input projection: one big matmul over the whole sequence.
    gx = jnp.dot(xs.reshape(T * B, INP).astype(jnp.bfloat16), w_ih_t,
                 preferred_element_type=jnp.float32) + bias            # (T*B, 4H) f32
    gx = gx.reshape(T, B, 4 * H)
    if t_pad != T:
        gx = jnp.concatenate(
            [gx, jnp.zeros((t_pad - T, B, 4 * H), gx.dtype)], axis=0)

    # ---- (5) Roll the dilated state so that step j of every window uses slot j.
    shift = jnp.mod(jnp.asarray(t0, jnp.int32), jnp.int32(r))
    h0r = jnp.roll(h0, -shift, axis=0)
    c0r = jnp.roll(c0, -shift, axis=0)

    kernel = functools.partial(_dilated_lstm_window_kernel,
                               r=r, hid=H, t_valid=T)

    # VMEM budget: resident W_hh^T (bf16, single-buffered) + double-buffered
    # gates_x / hs window blocks + two resident f32 state scratch buffers.
    state_bytes = r * B * H * 4
    vmem_est = (w_hh_t.size * 2
                + 2 * (r * B * 4 * H * 4)
                + 2 * (r * B * H * 4)
                + 2 * state_bytes)
    vmem_limit = int(min(max(2 * vmem_est, 8 * 1024 * 1024), 100 * 1024 * 1024))

    grid_spec = pltpu.PrefetchScalarGridSpec(
        num_scalar_prefetch=0,
        grid=(nw,),
        in_specs=[
            pl.BlockSpec((r, B, 4 * H), lambda w: (w, 0, 0)),        # gates_x window
            pl.BlockSpec((H, 4 * H), lambda w: (0, 0),
                         pipeline_mode=pl.Buffered(1)),              # W_hh^T resident, single buffer
            pl.BlockSpec(memory_space=pl.ANY),                       # h0 stays in HBM
            pl.BlockSpec(memory_space=pl.ANY),                       # c0 stays in HBM
        ],
        out_specs=[
            pl.BlockSpec((r, B, H), lambda w: (w, 0, 0)),            # per-step h_s
            pl.BlockSpec(memory_space=pl.ANY),                       # final h state (HBM)
            pl.BlockSpec(memory_space=pl.ANY),                       # final c state (HBM)
        ],
        scratch_shapes=[
            pltpu.VMEM((r, B, H), jnp.float32),                      # resident h state
            pltpu.VMEM((r, B, H), jnp.float32),                      # resident c state
        ],
    )

    hs_pad, h_new_r, c_new_r = pl.pallas_call(
        kernel,
        out_shape=(jax.ShapeDtypeStruct((t_pad, B, H), jnp.float32),
                   jax.ShapeDtypeStruct((r, B, H), jnp.float32),
                   jax.ShapeDtypeStruct((r, B, H), jnp.float32)),
        grid_spec=grid_spec,
        # Sequential recurrence over dilation windows.
        compiler_params=pltpu.CompilerParams(
            dimension_semantics=("arbitrary",),
            vmem_limit_bytes=vmem_limit),
    )(gx, w_hh_t, h0r, c0r)

    hs = hs_pad[:T]
    # Undo the slot rotation on the returned state.
    h_new = jnp.roll(h_new_r, shift, axis=0)
    c_new = jnp.roll(c_new_r, shift, axis=0)
    return hs, (h_new, c_new)


def dilated_lstm_forward(x, state, t, params, r):
    """Single-step forward matching DilatedLSTM.forward(x, state, t):
    returns (h_s, (h, c)) with slot t % r of the dilated state updated."""
    hs, new_state = dilated_lstm_sequence(x[None], state, t, params, r)
    return hs[0], new_state


def init_state(B, H, r):
    return (jnp.zeros((r, B, H), jnp.float32),
            jnp.zeros((r, B, H), jnp.float32))


def init_params(key, inp, hid):
    """nn.LSTMCell-style uniform(-k, k) init, pre-transposed for the kernel:
    W_ih^T (inp, 4*hid) bf16, W_hh^T (hid, 4*hid) bf16, bias = b_ih + b_hh f32."""
    k = 1.0 / math.sqrt(hid)
    k1, k2, k3, k4 = jax.random.split(key, 4)
    w_ih = jax.random.uniform(k1, (4 * hid, inp), jnp.float32, -k, k)
    w_hh = jax.random.uniform(k2, (4 * hid, hid), jnp.float32, -k, k)
    b_ih = jax.random.uniform(k3, (4 * hid,), jnp.float32, -k, k)
    b_hh = jax.random.uniform(k4, (4 * hid,), jnp.float32, -k, k)
    w_ih_t = w_ih.T.astype(jnp.bfloat16)
    w_hh_t = w_hh.T.astype(jnp.bfloat16)
    bias = (b_ih + b_hh).reshape(1, 4 * hid).astype(jnp.float32)
    return w_ih_t, w_hh_t, bias


def _reference_sequence(xs, state, t0, params, r):
    """Pure-JAX reference of T consecutive PyTorch DilatedLSTM.forward calls
    (same bf16-operand / f32-accumulate recipe as the kernel)."""
    h, c = state
    w_ih_t, w_hh_t, bias = params
    H = h.shape[-1]
    hs = []
    for step in range(xs.shape[0]):
        slot = (int(t0) + step) % r
        gx = jnp.dot(xs[step].astype(jnp.bfloat16), w_ih_t,
                     preferred_element_type=jnp.float32) + bias
        gh = jnp.dot(h[slot].astype(jnp.bfloat16), w_hh_t,
                     preferred_element_type=jnp.float32)
        gates = gx + gh
        i_g = jax.nn.sigmoid(gates[:, 0 * H:1 * H])
        f_g = jax.nn.sigmoid(gates[:, 1 * H:2 * H])
        g_g = jnp.tanh(gates[:, 2 * H:3 * H])
        o_g = jax.nn.sigmoid(gates[:, 3 * H:4 * H])
        c_s = f_g * c[slot] + i_g * g_g
        h_s = o_g * jnp.tanh(c_s)
        h = h.at[slot].set(h_s)
        c = c.at[slot].set(c_s)
        hs.append(h_s)
    return jnp.stack(hs), (h, c)


if __name__ == "__main__":
    # Small demo shapes; T % R != 0 exercises the ragged-tail masking path.
    B, INP, HID, R, T, T0 = 8, 128, 128, 3, 8, 5

    key = jax.random.PRNGKey(0)
    kx, kh, kc, kp = jax.random.split(key, 4)

    xs = jax.random.normal(kx, (T, B, INP), jnp.float32)
    # Non-zero state so the dilated slot selection matters.
    h0 = 0.1 * jax.random.normal(kh, (R, B, HID), jnp.float32)
    c0 = 0.1 * jax.random.normal(kc, (R, B, HID), jnp.float32)
    params = init_params(kp, INP, HID)

    # Fused-sequence kernel (jit-able; t0 is traced, r is static).
    seq_fn = jax.jit(dilated_lstm_sequence, static_argnums=(4,))
    hs, (h_new, c_new) = seq_fn(xs, (h0, c0), T0, params, R)
    jax.block_until_ready((hs, h_new, c_new))

    hs_ref, (h_ref, c_ref) = _reference_sequence(xs, (h0, c0), T0, params, R)
    assert jnp.allclose(hs, hs_ref, atol=5e-4, rtol=5e-4), \
        float(jnp.abs(hs - hs_ref).max())
    assert jnp.allclose(h_new, h_ref, atol=5e-4, rtol=5e-4)
    assert jnp.allclose(c_new, c_ref, atol=5e-4, rtol=5e-4)

    # Single-step call matching the PyTorch module's forward(x, state, t).
    h_s1, (h1, c1) = dilated_lstm_forward(xs[0], (h0, c0), T0, params, R)
    jax.block_until_ready((h_s1, h1, c1))
    hs1_ref, (h1_ref, c1_ref) = _reference_sequence(xs[:1], (h0, c0), T0, params, R)
    assert jnp.allclose(h_s1, hs1_ref[0], atol=5e-4, rtol=5e-4)
    assert jnp.allclose(h1, h1_ref, atol=5e-4, rtol=5e-4)
    assert jnp.allclose(c1, c1_ref, atol=5e-4, rtol=5e-4)

    print("KERNEL_OK")
</pallas_src>

<mosaic_0001>
module attributes {stable_mosaic.version = 11 : i64} {
  func.func @_dilated_lstm_window_kernel(%arg0: i32, %arg1: memref<3x8x512xf32, #tpu.memory_space<vmem>>, %arg2: memref<128x512xbf16, #tpu.memory_space<vmem>>, %arg3: memref<3x8x128xf32, #tpu.memory_space<any>>, %arg4: memref<3x8x128xf32, #tpu.memory_space<any>>, %arg5: memref<3x8x128xf32, #tpu.memory_space<vmem>>, %arg6: memref<3x8x128xf32, #tpu.memory_space<any>>, %arg7: memref<3x8x128xf32, #tpu.memory_space<any>>, %arg8: memref<3x8x128xf32, #tpu.memory_space<vmem>>, %arg9: memref<3x8x128xf32, #tpu.memory_space<vmem>>) attributes {dimension_semantics = [#tpu.dimension_semantics<arbitrary>], iteration_bounds = array<i64: 3>, scalar_prefetch = 0 : i64, scratch_operands = 2 : i64, tpu.core_type = #tpu.core_type<tc>, window_params = [{transform_indices = @transform_0, window_bounds = array<i64: 3, 8, 512>}, {pipeline_mode = #tpu.pipeline_mode<synchronous>, transform_indices = @transform_1, window_bounds = array<i64: 128, 512>}, {}, {}, {transform_indices = @transform_4, window_bounds = array<i64: 3, 8, 128>}, {}, {}]} {
    %c0_i32 = arith.constant 0 : i32
    %0 = arith.cmpi eq, %arg0, %c0_i32 : i32
    %1 = arith.extui %0 : i1 to i32
    %c0_i32_0 = arith.constant 0 : i32
    %2 = arith.cmpi ne, %1, %c0_i32_0 : i32
    scf.if %2 {
      "tpu.region"() ({
        %129 = tpu.sem_alloc : memref<!tpu.dma_semaphore, #tpu.memory_space<semaphore_mem>>
        tpu.enqueue_dma source(%arg3 : memref<3x8x128xf32, #tpu.memory_space<any>>) target(%arg8 : memref<3x8x128xf32, #tpu.memory_space<vmem>>) target_semaphore(%129 : memref<!tpu.dma_semaphore, #tpu.memory_space<semaphore_mem>>)
        tpu.wait_dma2 semaphore(%129 : memref<!tpu.dma_semaphore, #tpu.memory_space<semaphore_mem>>) src(%arg3 : memref<3x8x128xf32, #tpu.memory_space<any>>) dst(%arg8 : memref<3x8x128xf32, #tpu.memory_space<vmem>>)
        tpu.yield
      }) : () -> ()
      "tpu.region"() ({
        %129 = tpu.sem_alloc : memref<!tpu.dma_semaphore, #tpu.memory_space<semaphore_mem>>
        tpu.enqueue_dma source(%arg4 : memref<3x8x128xf32, #tpu.memory_space<any>>) target(%arg9 : memref<3x8x128xf32, #tpu.memory_space<vmem>>) target_semaphore(%129 : memref<!tpu.dma_semaphore, #tpu.memory_space<semaphore_mem>>)
        tpu.wait_dma2 semaphore(%129 : memref<!tpu.dma_semaphore, #tpu.memory_space<semaphore_mem>>) src(%arg4 : memref<3x8x128xf32, #tpu.memory_space<any>>) dst(%arg9 : memref<3x8x128xf32, #tpu.memory_space<vmem>>)
        tpu.yield
      }) : () -> ()
    } else {
    }
    %c0 = arith.constant 0 : index
    %c0_1 = arith.constant 0 : index
    %c0_2 = arith.constant 0 : index
    %3 = vector.load %arg8[%c0, %c0_1, %c0_2] : memref<3x8x128xf32, #tpu.memory_space<vmem>>, vector<3x8x128xf32>
    %4 = vector.shape_cast %3 : vector<3x8x128xf32> to vector<24x128xf32>
    %5 = arith.truncf %4 : vector<24x128xf32> to vector<24x128xbf16>
    %c0_3 = arith.constant 0 : index
    %c0_4 = arith.constant 0 : index
    %6 = vector.load %arg2[%c0_3, %c0_4] : memref<128x512xbf16, #tpu.memory_space<vmem>>, vector<128x512xbf16>
    %cst = arith.constant dense<0.000000e+00> : vector<24x512xf32>
    %7 = tpu.matmul %5, %6, %cst {dimension_numbers = #tpu.dot_dimension_numbers<[1], [0], [0], [1], [0, 0, 1, 1], [], []>} : vector<24x128xbf16>, vector<128x512xbf16>, vector<24x512xf32> -> vector<24x512xf32>
    %8 = vector.shape_cast %7 : vector<24x512xf32> to vector<3x8x512xf32>
    %c0_5 = arith.constant 0 : index
    %c0_6 = arith.constant 0 : index
    %c0_7 = arith.constant 0 : index
    %9 = vector.load %arg1[%c0_5, %c0_6, %c0_7] : memref<3x8x512xf32, #tpu.memory_space<vmem>>, vector<1x8x512xf32>
    %10 = vector.shape_cast %9 : vector<1x8x512xf32> to vector<8x512xf32>
    %11 = vector.extract_strided_slice %8 {offsets = [0, 0, 0], sizes = [1, 8, 512], strides = [1, 1, 1]} : vector<3x8x512xf32> to vector<1x8x512xf32>
    %12 = vector.shape_cast %11 : vector<1x8x512xf32> to vector<8x512xf32>
    %13 = arith.addf %10, %12 : vector<8x512xf32>
    %14 = vector.extract_strided_slice %13 {offsets = [0, 0], sizes = [8, 128], strides = [1, 1]} : vector<8x512xf32> to vector<8x128xf32>
    %15 = arith.negf %14 : vector<8x128xf32>
    %16 = math.exp %15 : vector<8x128xf32>
    %cst_8 = arith.constant 1.000000e+00 : f32
    %17 = vector.broadcast %cst_8 : f32 to vector<8x128xf32>
    %18 = arith.addf %17, %16 : vector<8x128xf32>
    %19 = arith.divf %17, %18 : vector<8x128xf32>
    %20 = vector.extract_strided_slice %13 {offsets = [0, 128], sizes = [8, 128], strides = [1, 1]} : vector<8x512xf32> to vector<8x128xf32>
    %21 = arith.negf %20 : vector<8x128xf32>
    %22 = math.exp %21 : vector<8x128xf32>
    %cst_9 = arith.constant 1.000000e+00 : f32
    %23 = vector.broadcast %cst_9 : f32 to vector<8x128xf32>
    %24 = arith.addf %23, %22 : vector<8x128xf32>
    %25 = arith.divf %23, %24 : vector<8x128xf32>
    %26 = vector.extract_strided_slice %13 {offsets = [0, 256], sizes = [8, 128], strides = [1, 1]} : vector<8x512xf32> to vector<8x128xf32>
    %27 = math.tanh %26 : vector<8x128xf32>
    %28 = vector.extract_strided_slice %13 {offsets = [0, 384], sizes = [8, 128], strides = [1, 1]} : vector<8x512xf32> to vector<8x128xf32>
    %29 = arith.negf %28 : vector<8x128xf32>
    %30 = math.exp %29 : vector<8x128xf32>
    %cst_10 = arith.constant 1.000000e+00 : f32
    %31 = vector.broadcast %cst_10 : f32 to vector<8x128xf32>
    %32 = arith.addf %31, %30 : vector<8x128xf32>
    %33 = arith.divf %31, %32 : vector<8x128xf32>
    %c0_11 = arith.constant 0 : index
    %c0_12 = arith.constant 0 : index
    %c0_13 = arith.constant 0 : index
    %34 = vector.load %arg9[%c0_11, %c0_12, %c0_13] : memref<3x8x128xf32, #tpu.memory_space<vmem>>, vector<1x8x128xf32>
    %35 = vector.shape_cast %34 : vector<1x8x128xf32> to vector<8x128xf32>
    %36 = arith.mulf %25, %35 : vector<8x128xf32>
    %37 = arith.mulf %19, %27 : vector<8x128xf32>
    %38 = arith.addf %36, %37 : vector<8x128xf32>
    %39 = math.tanh %38 : vector<8x128xf32>
    %40 = arith.mulf %33, %39 : vector<8x128xf32>
    %c0_14 = arith.constant 0 : index
    %c0_15 = arith.constant 0 : index
    %c0_16 = arith.constant 0 : index
    %41 = vector.load %arg8[%c0_14, %c0_15, %c0_16] : memref<3x8x128xf32, #tpu.memory_space<vmem>>, vector<1x8x128xf32>
    %42 = vector.shape_cast %41 : vector<1x8x128xf32> to vector<8x128xf32>
    %43 = vector.shape_cast %40 : vector<8x128xf32> to vector<1x8x128xf32>
    tpu.vector_store %arg8[%c0_14, %c0_15, %c0_16], %43 {strides = array<i32>} : memref<3x8x128xf32, #tpu.memory_space<vmem>>, vector<1x8x128xf32>,
    %c0_17 = arith.constant 0 : index
    %c0_18 = arith.constant 0 : index
    %c0_19 = arith.constant 0 : index
    %44 = vector.load %arg9[%c0_17, %c0_18, %c0_19] : memref<3x8x128xf32, #tpu.memory_space<vmem>>, vector<1x8x128xf32>
    %45 = vector.shape_cast %44 : vector<1x8x128xf32> to vector<8x128xf32>
    %46 = vector.shape_cast %38 : vector<8x128xf32> to vector<1x8x128xf32>
    tpu.vector_store %arg9[%c0_17, %c0_18, %c0_19], %46 {strides = array<i32>} : memref<3x8x128xf32, #tpu.memory_space<vmem>>, vector<1x8x128xf32>,
    %c0_20 = arith.constant 0 : index
    %c0_21 = arith.constant 0 : index
    %c0_22 = arith.constant 0 : index
    %47 = vector.load %arg5[%c0_20, %c0_21, %c0_22] : memref<3x8x128xf32, #tpu.memory_space<vmem>>, vector<1x8x128xf32>
    %48 = vector.shape_cast %47 : vector<1x8x128xf32> to vector<8x128xf32>
    %49 = vector.shape_cast %40 : vector<8x128xf32> to vector<1x8x128xf32>
    tpu.vector_store %arg5[%c0_20, %c0_21, %c0_22], %49 {strides = array<i32>} : memref<3x8x128xf32, #tpu.memory_space<vmem>>, vector<1x8x128xf32>,
    %c1 = arith.constant 1 : index
    %c0_23 = arith.constant 0 : index
    %c0_24 = arith.constant 0 : index
    %50 = vector.load %arg1[%c1, %c0_23, %c0_24] : memref<3x8x512xf32, #tpu.memory_space<vmem>>, vector<1x8x512xf32>
    %51 = vector.shape_cast %50 : vector<1x8x512xf32> to vector<8x512xf32>
    %52 = vector.extract_strided_slice %8 {offsets = [1, 0, 0], sizes = [1, 8, 512], strides = [1, 1, 1]} : vector<3x8x512xf32> to vector<1x8x512xf32>
    %53 = vector.shape_cast %52 : vector<1x8x512xf32> to vector<8x512xf32>
    %54 = arith.addf %51, %53 : vector<8x512xf32>
    %55 = vector.extract_strided_slice %54 {offsets = [0, 0], sizes = [8, 128], strides = [1, 1]} : vector<8x512xf32> to vector<8x128xf32>
    %56 = arith.negf %55 : vector<8x128xf32>
    %57 = math.exp %56 : vector<8x128xf32>
    %cst_25 = arith.constant 1.000000e+00 : f32
    %58 = vector.broadcast %cst_25 : f32 to vector<8x128xf32>
    %59 = arith.addf %58, %57 : vector<8x128xf32>
    %60 = arith.divf %58, %59 : vector<8x128xf32>
    %61 = vector.extract_strided_slice %54 {offsets = [0, 128], sizes = [8, 128], strides = [1, 1]} : vector<8x512xf32> to vector<8x128xf32>
    %62 = arith.negf %61 : vector<8x128xf32>
    %63 = math.exp %62 : vector<8x128xf32>
    %cst_26 = arith.constant 1.000000e+00 : f32
    %64 = vector.broadcast %cst_26 : f32 to vector<8x128xf32>
    %65 = arith.addf %64, %63 : vector<8x128xf32>
    %66 = arith.divf %64, %65 : vector<8x128xf32>
    %67 = vector.extract_strided_slice %54 {offsets = [0, 256], sizes = [8, 128], strides = [1, 1]} : vector<8x512xf32> to vector<8x128xf32>
    %68 = math.tanh %67 : vector<8x128xf32>
    %69 = vector.extract_strided_slice %54 {offsets = [0, 384], sizes = [8, 128], strides = [1, 1]} : vector<8x512xf32> to vector<8x128xf32>
    %70 = arith.negf %69 : vector<8x128xf32>
    %71 = math.exp %70 : vector<8x128xf32>
    %cst_27 = arith.constant 1.000000e+00 : f32
    %72 = vector.broadcast %cst_27 : f32 to vector<8x128xf32>
    %73 = arith.addf %72, %71 : vector<8x128xf32>
    %74 = arith.divf %72, %73 : vector<8x128xf32>
    %c1_28 = arith.constant 1 : index
    %c0_29 = arith.constant 0 : index
    %c0_30 = arith.constant 0 : index
    %75 = vector.load %arg9[%c1_28, %c0_29, %c0_30] : memref<3x8x128xf32, #tpu.memory_space<vmem>>, vector<1x8x128xf32>
    %76 = vector.shape_cast %75 : vector<1x8x128xf32> to vector<8x128xf32>
    %77 = arith.mulf %66, %76 : vector<8x128xf32>
    %78 = arith.mulf %60, %68 : vector<8x128xf32>
    %79 = arith.addf %77, %78 : vector<8x128xf32>
    %80 = math.tanh %79 : vector<8x128xf32>
    %81 = arith.mulf %74, %80 : vector<8x128xf32>
    %c1_31 = arith.constant 1 : index
    %c0_32 = arith.constant 0 : index
    %c0_33 = arith.constant 0 : index
    %82 = vector.load %arg8[%c1_31, %c0_32, %c0_33] : memref<3x8x128xf32, #tpu.memory_space<vmem>>, vector<1x8x128xf32>
    %83 = vector.shape_cast %82 : vector<1x8x128xf32> to vector<8x128xf32>
    %84 = vector.shape_cast %81 : vector<8x128xf32> to vector<1x8x128xf32>
    tpu.vector_store %arg8[%c1_31, %c0_32, %c0_33], %84 {strides = array<i32>} : memref<3x8x128xf32, #tpu.memory_space<vmem>>, vector<1x8x128xf32>,
    %c1_34 = arith.constant 1 : index
    %c0_35 = arith.constant 0 : index
    %c0_36 = arith.constant 0 : index
    %85 = vector.load %arg9[%c1_34, %c0_35, %c0_36] : memref<3x8x128xf32, #tpu.memory_space<vmem>>, vector<1x8x128xf32>
    %86 = vector.shape_cast %85 : vector<1x8x128xf32> to vector<8x128xf32>
    %87 = vector.shape_cast %79 : vector<8x128xf32> to vector<1x8x128xf32>
    tpu.vector_store %arg9[%c1_34, %c0_35, %c0_36], %87 {strides = array<i32>} : memref<3x8x128xf32, #tpu.memory_space<vmem>>, vector<1x8x128xf32>,
    %c1_37 = arith.constant 1 : index
    %c0_38 = arith.constant 0 : index
    %c0_39 = arith.constant 0 : index
    %88 = vector.load %arg5[%c1_37, %c0_38, %c0_39] : memref<3x8x128xf32, #tpu.memory_space<vmem>>, vector<1x8x128xf32>
    %89 = vector.shape_cast %88 : vector<1x8x128xf32> to vector<8x128xf32>
    %90 = vector.shape_cast %81 : vector<8x128xf32> to vector<1x8x128xf32>
    tpu.vector_store %arg5[%c1_37, %c0_38, %c0_39], %90 {strides = array<i32>} : memref<3x8x128xf32, #tpu.memory_space<vmem>>, vector<1x8x128xf32>,
    %c2 = arith.constant 2 : index
    %c0_40 = arith.constant 0 : index
    %c0_41 = arith.constant 0 : index
    %91 = vector.load %arg1[%c2, %c0_40, %c0_41] : memref<3x8x512xf32, #tpu.memory_space<vmem>>, vector<1x8x512xf32>
    %92 = vector.shape_cast %91 : vector<1x8x512xf32> to vector<8x512xf32>
    %93 = vector.extract_strided_slice %8 {offsets = [2, 0, 0], sizes = [1, 8, 512], strides = [1, 1, 1]} : vector<3x8x512xf32> to vector<1x8x512xf32>
    %94 = vector.shape_cast %93 : vector<1x8x512xf32> to vector<8x512xf32>
    %95 = arith.addf %92, %94 : vector<8x512xf32>
    %96 = vector.extract_strided_slice %95 {offsets = [0, 0], sizes = [8, 128], strides = [1, 1]} : vector<8x512xf32> to vector<8x128xf32>
    %97 = arith.negf %96 : vector<8x128xf32>
    %98 = math.exp %97 : vector<8x128xf32>
    %cst_42 = arith.constant 1.000000e+00 : f32
    %99 = vector.broadcast %cst_42 : f32 to vector<8x128xf32>
    %100 = arith.addf %99, %98 : vector<8x128xf32>
    %101 = arith.divf %99, %100 : vector<8x128xf32>
    %102 = vector.extract_strided_slice %95 {offsets = [0, 128], sizes = [8, 128], strides = [1, 1]} : vector<8x512xf32> to vector<8x128xf32>
    %103 = arith.negf %102 : vector<8x128xf32>
    %104 = math.exp %103 : vector<8x128xf32>
    %cst_43 = arith.constant 1.000000e+00 : f32
    %105 = vector.broadcast %cst_43 : f32 to vector<8x128xf32>
    %106 = arith.addf %105, %104 : vector<8x128xf32>
    %107 = arith.divf %105, %106 : vector<8x128xf32>
    %108 = vector.extract_strided_slice %95 {offsets = [0, 256], sizes = [8, 128], strides = [1, 1]} : vector<8x512xf32> to vector<8x128xf32>
    %109 = math.tanh %108 : vector<8x128xf32>
    %110 = vector.extract_strided_slice %95 {offsets = [0, 384], sizes = [8, 128], strides = [1, 1]} : vector<8x512xf32> to vector<8x128xf32>
    %111 = arith.negf %110 : vector<8x128xf32>
    %112 = math.exp %111 : vector<8x128xf32>
    %cst_44 = arith.constant 1.000000e+00 : f32
    %113 = vector.broadcast %cst_44 : f32 to vector<8x128xf32>
    %114 = arith.addf %113, %112 : vector<8x128xf32>
    %115 = arith.divf %113, %114 : vector<8x128xf32>
    %c2_45 = arith.constant 2 : index
    %c0_46 = arith.constant 0 : index
    %c0_47 = arith.constant 0 : index
    %116 = vector.load %arg9[%c2_45, %c0_46, %c0_47] : memref<3x8x128xf32, #tpu.memory_space<vmem>>, vector<1x8x128xf32>
    %117 = vector.shape_cast %116 : vector<1x8x128xf32> to vector<8x128xf32>
    %118 = arith.mulf %107, %117 : vector<8x128xf32>
    %119 = arith.mulf %101, %109 : vector<8x128xf32>
    %120 = arith.addf %118, %119 : vector<8x128xf32>
    %121 = math.tanh %120 : vector<8x128xf32>
    %122 = arith.mulf %115, %121 : vector<8x128xf32>
    %c2_i32 = arith.constant 2 : i32
    %123 = arith.cmpi slt, %arg0, %c2_i32 : i32
    %124 = arith.extui %123 : i1 to i32
    %c0_i32_48 = arith.constant 0 : i32
    %125 = arith.cmpi ne, %124, %c0_i32_48 : i32
    scf.if %125 {
      %c2_51 = arith.constant 2 : index
      %c0_52 = arith.constant 0 : index
      %c0_53 = arith.constant 0 : index
      %129 = vector.load %arg8[%c2_51, %c0_52, %c0_53] : memref<3x8x128xf32, #tpu.memory_space<vmem>>, vector<1x8x128xf32>
      %130 = vector.shape_cast %129 : vector<1x8x128xf32> to vector<8x128xf32>
      %131 = vector.shape_cast %122 : vector<8x128xf32> to vector<1x8x128xf32>
      tpu.vector_store %arg8[%c2_51, %c0_52, %c0_53], %131 {strides = array<i32>} : memref<3x8x128xf32, #tpu.memory_space<vmem>>, vector<1x8x128xf32>,
      %c2_54 = arith.constant 2 : index
      %c0_55 = arith.constant 0 : index
      %c0_56 = arith.constant 0 : index
      %132 = vector.load %arg9[%c2_54, %c0_55, %c0_56] : memref<3x8x128xf32, #tpu.memory_space<vmem>>, vector<1x8x128xf32>
      %133 = vector.shape_cast %132 : vector<1x8x128xf32> to vector<8x128xf32>
      %134 = vector.shape_cast %120 : vector<8x128xf32> to vector<1x8x128xf32>
      tpu.vector_store %arg9[%c2_54, %c0_55, %c0_56], %134 {strides = array<i32>} : memref<3x8x128xf32, #tpu.memory_space<vmem>>, vector<1x8x128xf32>,
      %c2_57 = arith.constant 2 : index
      %c0_58 = arith.constant 0 : index
      %c0_59 = arith.constant 0 : index
      %135 = vector.load %arg5[%c2_57, %c0_58, %c0_59] : memref<3x8x128xf32, #tpu.memory_space<vmem>>, vector<1x8x128xf32>
      %136 = vector.shape_cast %135 : vector<1x8x128xf32> to vector<8x128xf32>
      %137 = vector.shape_cast %122 : vector<8x128xf32> to vector<1x8x128xf32>
      tpu.vector_store %arg5[%c2_57, %c0_58, %c0_59], %137 {strides = array<i32>} : memref<3x8x128xf32, #tpu.memory_space<vmem>>, vector<1x8x128xf32>,
    } else {
    }
    %c2_i32_49 = arith.constant 2 : i32
    %126 = arith.cmpi eq, %arg0, %c2_i32_49 : i32
    %127 = arith.extui %126 : i1 to i32
    %c0_i32_50 = arith.constant 0 : i32
    %128 = arith.cmpi ne, %127, %c0_i32_50 : i32
    scf.if %128 {
      "tpu.region"() ({
        %129 = tpu.sem_alloc : memref<!tpu.dma_semaphore, #tpu.memory_space<semaphore_mem>>
        tpu.enqueue_dma source(%arg8 : memref<3x8x128xf32, #tpu.memory_space<vmem>>) target(%arg6 : memref<3x8x128xf32, #tpu.memory_space<any>>) target_semaphore(%129 : memref<!tpu.dma_semaphore, #tpu.memory_space<semaphore_mem>>)
        tpu.wait_dma2 semaphore(%129 : memref<!tpu.dma_semaphore, #tpu.memory_space<semaphore_mem>>) src(%arg8 : memref<3x8x128xf32, #tpu.memory_space<vmem>>) dst(%arg6 : memref<3x8x128xf32, #tpu.memory_space<any>>)
        tpu.yield
      }) : () -> ()
      "tpu.region"() ({
        %129 = tpu.sem_alloc : memref<!tpu.dma_semaphore, #tpu.memory_space<semaphore_mem>>
        tpu.enqueue_dma source(%arg9 : memref<3x8x128xf32, #tpu.memory_space<vmem>>) target(%arg7 : memref<3x8x128xf32, #tpu.memory_space<any>>) target_semaphore(%129 : memref<!tpu.dma_semaphore, #tpu.memory_space<semaphore_mem>>)
        tpu.wait_dma2 semaphore(%129 : memref<!tpu.dma_semaphore, #tpu.memory_space<semaphore_mem>>) src(%arg9 : memref<3x8x128xf32, #tpu.memory_space<vmem>>) dst(%arg7 : memref<3x8x128xf32, #tpu.memory_space<any>>)
        tpu.yield
      }) : () -> ()
    } else {
    }
    return
  }
  func.func @transform_0(%arg0: i32) -> (i32, i32, i32) {
    %c0_i32 = arith.constant 0 : i32
    %c0_i32_0 = arith.constant 0 : i32
    %c0_i32_1 = arith.constant 0 : i32
    return %arg0, %c0_i32, %c0_i32_0 : i32, i32, i32
  }
  func.func @transform_1(%arg0: i32) -> (i32, i32) {
    %c0_i32 = arith.constant 0 : i32
    %c0_i32_0 = arith.constant 0 : i32
    %c0_i32_1 = arith.constant 0 : i32
    return %c0_i32, %c0_i32_0 : i32, i32
  }
  func.func @transform_4(%arg0: i32) -> (i32, i32, i32) {
    %c0_i32 = arith.constant 0 : i32
    %c0_i32_0 = arith.constant 0 : i32
    %c0_i32_1 = arith.constant 0 : i32
    return %arg0, %c0_i32, %c0_i32_0 : i32, i32, i32
  }
}

</mosaic_0001>

<llo_original>
// kernel: dilated_lstm_sequence.1
$region0: #{dilated_lstm_sequence.1}
  #allocation0 [shape = 'u32[]', space=smem, size = 0x4, offset = 0x4, fixed_abs, tag = 'smem constant byte address 0x4 - core index']
  #allocation1 [shape = 'u32[144,128]{1,0:T(1,128)}', space=vmem, size = 0x12000, scoped, tag = 'internal scratch']
  #allocation2 [shape = 'f32[3,8,128]{2,1,0:T(8,128)}', space=vmem, size = 0x3000, scoped, tag = 'scratch operand']
  #allocation3 [shape = 'f32[3,8,128]{2,1,0:T(8,128)}', space=vmem, size = 0x3000, scoped, tag = 'scratch operand']
  #allocation5 [shape = 's32[]', space=sflag, size = 0x4, offset = 0, fixed_abs, tag = 'sflag constant byte address 0x0 - dummy sync flag']
  #allocation7 [shape = 's32[]', space=sflag, size = 0x4, offset = 0, fixed_abs, tag = 'sflag constant byte address 0x0 - dummy sync flag']
  #allocation9 [shape = 's32[]', space=sflag, size = 0x4, offset = 0, fixed_abs, tag = 'sflag constant byte address 0x0 - dummy sync flag']
  #allocation11 [shape = 's32[]', space=sflag, size = 0x4, offset = 0, fixed_abs, tag = 'sflag constant byte address 0x0 - dummy sync flag']
  %s0 = inlined_call_operand.vmem [shape: f32[9,8,512], index: 0, kind: input, shape index: {}]
  %s1 = inlined_call_operand.vmem [shape: bf16[128,512], index: 1, kind: input, shape index: {}]
  %s2 = inlined_call_operand.vmem [shape: f32[3,8,128], index: 2, kind: input, shape index: {}]
  %s3 = inlined_call_operand.vmem [shape: f32[3,8,128], index: 3, kind: input, shape index: {}]
  %s4 = inlined_call_operand.vmem [shape: f32[9,8,128], index: 4, kind: output, shape index: {0}]
  %s5 = inlined_call_operand.vmem [shape: f32[3,8,128], index: 5, kind: output, shape index: {1}]
  %s6 = inlined_call_operand.vmem [shape: f32[3,8,128], index: 6, kind: output, shape index: {2}]
  %7 = xla_tuple %s4, %s5, %s6
  %s8 = sld [smem:[#allocation0]]
  $region193: #{dilated_lstm_sequence.1} parent=0
    _
  %s10 = ssub.s32 1, %s8
  %s11 = scalar_select 0, %s10, %s8
  loop: start=0, step=1, limit=5
  $region2: #{dilated_lstm_sequence.1} parent=0 // loop_pre_header
    _
  $region3: #{dilated_lstm_sequence.1} parent=0 // loop_header
    %s13 = sphi 0, %s17
    %p14 = scmp.ge.s32.totalorder %s13, 5
    %s23 = sphi 0, %s25
    %s26 = sphi 0, %s23
    %s27 = sphi 0, %s26
    %s43 = sphi 0, %s27
    %s47 = sphi 0, %s47
    %s49 = sphi 0, %s47
    %s50 = sphi 0, %s49
    %s64 = sphi 0, %s50
    %s70 = sphi 0, %s72
    %s73 = sphi 0, %s70
    %s74 = sphi 0, %s73
    %s90 = sphi 0, %s74
  $region4: #{dilated_lstm_sequence.1} parent=0 // loop_header_branch
    %16 = sbr.rel (%p14) target = $region8
  $region5: #{dilated_lstm_sequence.1} parent=0 // loop_body
    %s18 = ssub.s32 %s13, 1
    %s19 = ssub.s32 %s13, 2
    %s20 = sadd.s32 %s13, 1
    %s21 = ssub.s32 %s13, %s20
    %p22 = scmp.eq.s32.totalorder %s21, 0
    %s24 = sadd.s32 %s23, 1
    %s25 = scalar_select %p22, %s23, %s24
    %p28 = pneg %p22
    %p29 = scmp.eq.s32.totalorder %s13, 2
    %p30 = por %p28, %p29
    %p31 = scmp.ne.s32.totalorder %s23, %s26
    %p32 = scmp.eq.s32.totalorder %s13, 0
    %p33 = por %p31, %p32
    %p34 = scmp.ne.s32.totalorder %s23, %s26
    %p35 = scmp.eq.s32.totalorder %s18, 2
    %p36 = por %p34, %p35
    %p37 = scmp.ne.s32.totalorder %s26, %s27
    %p38 = scmp.eq.s32.totalorder %s18, 0
    %p39 = por %p37, %p38
    %p40 = scmp.ne.s32.totalorder %s26, %s27
    %p41 = scmp.eq.s32.totalorder %s19, 2
    %p42 = por %p40, %p41
    %p44 = scmp.ne.s32.totalorder %s27, %s43
    %p45 = scmp.eq.s32.totalorder %s19, 0
    %p46 = por %p44, %p45
    %s48 = sadd.s32 %s47, 1
    %p51 = scmp.eq.s32.totalorder %s13, 2
    %p52 = scmp.ne.s32.totalorder %s47, %s49
    %p53 = scmp.eq.s32.totalorder %s13, 0
    %p54 = por %p52, %p53
    %p55 = scmp.ne.s32.totalorder %s47, %s49
    %p56 = scmp.eq.s32.totalorder %s18, 2
    %p57 = por %p55, %p56
    %p58 = scmp.ne.s32.totalorder %s49, %s50
    %p59 = scmp.eq.s32.totalorder %s18, 0
    %p60 = por %p58, %p59
    %p61 = scmp.ne.s32.totalorder %s49, %s50
    %p62 = scmp.eq.s32.totalorder %s19, 2
    %p63 = por %p61, %p62
    %p65 = scmp.ne.s32.totalorder %s50, %s64
    %p66 = scmp.eq.s32.totalorder %s19, 0
    %p67 = por %p65, %p66
    %s68 = ssub.s32 %s13, %s20
    %p69 = scmp.eq.s32.totalorder %s68, 0
    %s71 = sadd.s32 %s70, 1
    %s72 = scalar_select %p69, %s70, %s71
    %p75 = pneg %p69
    %p76 = scmp.eq.s32.totalorder %s13, 2
    %p77 = por %p75, %p76
    %p78 = scmp.ne.s32.totalorder %s70, %s73
    %p79 = scmp.eq.s32.totalorder %s13, 0
    %p80 = por %p78, %p79
    %p81 = scmp.ne.s32.totalorder %s70, %s73
    %p82 = scmp.eq.s32.totalorder %s18, 2
    %p83 = por %p81, %p82
    %p84 = scmp.ne.s32.totalorder %s73, %s74
    %p85 = scmp.eq.s32.totalorder %s18, 0
    %p86 = por %p84, %p85
    %p87 = scmp.ne.s32.totalorder %s73, %s74
    %p88 = scmp.eq.s32.totalorder %s19, 2
    %p89 = por %p87, %p88
    %p91 = scmp.ne.s32.totalorder %s74, %s90
    %p92 = scmp.eq.s32.totalorder %s19, 0
    %p93 = por %p91, %p92
    %p94 = scmp.le.s32.totalorder 1, %s13
    %p95 = scmp.lt.s32.totalorder %s13, 4
    %p96 = pnand %p94, %p95
    %p97 = pneg %p96
    // Predicated region
    $region9: #{dilated_lstm_sequence.1} parent=5 // pred_check
      _
    $region10: #{dilated_lstm_sequence.1} parent=5 // pred_check_branch
      %99 = sbr.rel (%p96) target = $region12
    $region11: #{dilated_lstm_sequence.1} parent=5 // pred_region
      %s100 = ssub.s32 %s13, 1
      // Predicated region
      $region13: #{dilated_lstm_sequence.1} parent=11 // pred_check
        %p101 = pneg %p60
      $region14: #{dilated_lstm_sequence.1} parent=11 // pred_check_branch
        %103 = sbr.rel (%p101) target = $region16
      $region15: #{dilated_lstm_sequence.1} parent=11 // pred_region
        _
      $region16: #{dilated_lstm_sequence.1} parent=11 // pred_fallthru
        _
    $region12: #{dilated_lstm_sequence.1} parent=5 // pred_fallthru
      _
    %p104 = scmp.lt.s32.totalorder %s13, 3
    // Predicated region
    $region17: #{dilated_lstm_sequence.1} parent=5 // pred_check
      %p105 = pneg %p104
    $region18: #{dilated_lstm_sequence.1} parent=5 // pred_check_branch
      %107 = sbr.rel (%p105) target = $region20
    $region19: #{dilated_lstm_sequence.1} parent=5 // pred_region
      // Predicated region
      $region21: #{dilated_lstm_sequence.1} parent=19 // pred_check
        %p108 = pneg %p33
      $region22: #{dilated_lstm_sequence.1} parent=19 // pred_check_branch
        %110 = sbr.rel (%p108) target = $region24
      $region23: #{dilated_lstm_sequence.1} parent=19 // pred_region
        %s111 = smul.u32 3, %s13
        %p112 = scmp.lt.s32.totalorder %s111, 8
        %s113 = scalar_select %p112, %s111, 8
        %s114 = smul.addr %s113, 4
        %s115 = smul.addr %s114, 8
        %s116 = scalar_lea.vmem %s0, %s115
        %s117 = smul.u32 3, %s13
      $region24: #{dilated_lstm_sequence.1} parent=19 // pred_fallthru
        _
    $region20: #{dilated_lstm_sequence.1} parent=5 // pred_fallthru
      _
    %p118 = scmp.le.s32.totalorder 1, %s13
    %p119 = scmp.lt.s32.totalorder %s13, 4
    %p120 = pnand %p118, %p119
    %p121 = pneg %p120
    // Predicated region
    $region25: #{dilated_lstm_sequence.1} parent=5 // pred_check
      _
    $region26: #{dilated_lstm_sequence.1} parent=5 // pred_check_branch
      %123 = sbr.rel (%p120) target = $region28
    $region27: #{dilated_lstm_sequence.1} parent=5 // pred_region
      %s124 = ssub.s32 %s13, 1
      %s125 = smul.u32 3, %s18
      %p126 = scmp.lt.s32.totalorder %s125, 8
      %s127 = scalar_select %p126, %s125, 8
      %s128 = smul.addr %s127, 4
      %s129 = smul.addr %s128, 8
      %s130 = scalar_lea.vmem %s0, %s129
      %p131 = pneg %p39
      %p132 = pneg %p36
      %p133 = pneg %p60
      %p134 = pneg %p57
      %p135 = pneg %p86
      %p136 = pneg %p83
      %s137 = smul.u32 3, %s18
      %p138 = scmp.lt.s32.totalorder %s137, 8
      %s139 = scalar_select %p138, %s137, 8
      %s140 = smul.addr %s139, 8
      %s141 = scalar_lea.vmem %s4, %s140
      %s142 = smul.u32 3, %s18
      %p143 = scmp.lt.s32.totalorder %s142, 8
      %s144 = scalar_select %p143, %s142, 8
      %s145 = smul.addr %s144, 4
      %s146 = smul.addr %s145, 8
      %s147 = scalar_lea.vmem %s0, %s146
      %s148 = smul.u32 3, %s18
      %s149 = smul.u32 3, %s18
      %p150 = scmp.lt.s32.totalorder %s149, 8
      %s151 = scalar_select %p150, %s149, 8
      %s152 = smul.addr %s151, 8
      %s153 = scalar_lea.vmem %s4, %s152
      %s154 = smul.u32 3, %s18
      %p156 = scmp.eq.s32.totalorder %s18, 0
      // Predicated region
      $region29: #{dilated_lstm_sequence.1} parent=27 // pred_check
        %p157 = pneg %p156
      $region30: #{dilated_lstm_sequence.1} parent=27 // pred_check_branch
        %159 = sbr.rel (%p157) target = $region32
      $region31: #{dilated_lstm_sequence.1} parent=27 // pred_region
        $region33: #{dilated_lstm_sequence.1} parent=31
          #allocation4 [shape = 's32[1]{0}', space=sflag, size = 0x4, scoped, tag = 'scoped memory for dilated_lstm_sequence.1']
          %p161 = scmp.lt.u32.totalorder 24, 8
          %p162 = pneg %p161
          // Predicated region
          $region34: #{dilated_lstm_sequence.1} parent=33 // pred_check
            _
          $region35: #{dilated_lstm_sequence.1} parent=33 // pred_check_branch
            %164 = sbr.rel (%p161) target = $region37
          $region36: #{dilated_lstm_sequence.1} parent=33 // pred_region
            %s179 = sand.u32 24, 7
            %p180 = scmp.eq.s32.totalorder %s179, 0
            // Predicated region
            $region49: #{dilated_lstm_sequence.1} parent=36 // pred_check
              %p181 = pneg %p180
            $region50: #{dilated_lstm_sequence.1} parent=36 // pred_check_branch
              %183 = sbr.rel (%p181) target = $region52
            $region51: #{dilated_lstm_sequence.1} parent=36 // pred_region
              loop: start=0, step=1, limit=1
              $region53: #{dilated_lstm_sequence.1} parent=51 // loop_pre_header
                _
              $region54: #{dilated_lstm_sequence.1} parent=51 // loop_header
                %s185 = sphi 0, %s189
                %p186 = scmp.ge.s32.totalorder %s185, 1
                %s190 = sphi %s2, %s2
                %s191 = sphi [#allocation2], [#allocation2]
              $region55: #{dilated_lstm_sequence.1} parent=51 // loop_header_branch
                %188 = sbr.rel (%p186) target = $region59
              $region56: #{dilated_lstm_sequence.1} parent=51 // loop_body
                %v192 = vld [vmem:[%s190] sm:$0xff]
                %193 = vst [vmem:[%s191] sm:$0xff] %v192
                %v194 = vld [vmem:[%s190 + $0x8] sm:$0xff]
                %195 = vst [vmem:[%s191 + $0x8] sm:$0xff] %v194
                %v196 = vld [vmem:[%s190 + $0x10] sm:$0xff]
                %197 = vst [vmem:[%s191 + $0x10] sm:$0xff] %v196
              $region57: #{dilated_lstm_sequence.1} parent=51 // loop_footer
                %s189 = sadd.s32 1, %s185
              $region58: #{dilated_lstm_sequence.1} parent=51 // loop_footer_branch
                %184 = sbr.rel target = $region54
              $region59: #{dilated_lstm_sequence.1} parent=51 // loop_exit
                _
            $region52: #{dilated_lstm_sequence.1} parent=36 // pred_fallthru
              _
            %p198 = pneg %p180
            // Predicated region
            $region60: #{dilated_lstm_sequence.1} parent=36 // pred_check
              _
            $region61: #{dilated_lstm_sequence.1} parent=36 // pred_check_branch
              %200 = sbr.rel (%p180) target = $region63
            $region62: #{dilated_lstm_sequence.1} parent=36 // pred_region
              %s201 = sand.u32 24, 7
            $region63: #{dilated_lstm_sequence.1} parent=36 // pred_fallthru
              _
          $region37: #{dilated_lstm_sequence.1} parent=33 // pred_fallthru
            _
          // Predicated region
          $region38: #{dilated_lstm_sequence.1} parent=33 // pred_check
            %p165 = pneg %p161
          $region39: #{dilated_lstm_sequence.1} parent=33 // pred_check_branch
            %167 = sbr.rel (%p165) target = $region41
          $region40: #{dilated_lstm_sequence.1} parent=33 // pred_region
            %s168 = sshllo.u32 0, 24
            loop: start=0, step=1, limit=1
            $region42: #{dilated_lstm_sequence.1} parent=40 // loop_pre_header
              _
            $region43: #{dilated_lstm_sequence.1} parent=40 // loop_header
              %s170 = sphi 0, %s174
              %p171 = scmp.ge.s32.totalorder %s170, 1
              %s175 = sphi %s2, %s2
              %s176 = sphi [#allocation2], [#allocation2]
            $region44: #{dilated_lstm_sequence.1} parent=40 // loop_header_branch
              %173 = sbr.rel (%p171) target = $region48
            $region45: #{dilated_lstm_sequence.1} parent=40 // loop_body
              %v177 = vld [vmem:[%s175] sm:%s168]
              %178 = vst [vmem:[%s176] sm:%s168] %v177
            $region46: #{dilated_lstm_sequence.1} parent=40 // loop_footer
              %s174 = sadd.s32 1, %s170
            $region47: #{dilated_lstm_sequence.1} parent=40 // loop_footer_branch
              %169 = sbr.rel target = $region43
            $region48: #{dilated_lstm_sequence.1} parent=40 // loop_exit
              _
          $region41: #{dilated_lstm_sequence.1} parent=33 // pred_fallthru
            _
          // Predicated region
          $region64: #{dilated_lstm_sequence.1} parent=33 // pred_check
            _
          $region65: #{dilated_lstm_sequence.1} parent=33 // pred_check_branch
            %204 = sbr.rel (0) target = $region67
          $region66: #{dilated_lstm_sequence.1} parent=33 // pred_region
            %205 = vsyncadd [#allocation4], 384
          $region67: #{dilated_lstm_sequence.1} parent=33 // pred_fallthru
            _
          %s206 = smul.u32 3, 8
          %s207 = smul.u32 %s206, 1
          %s208 = sshll.u32 %s207, 4
          %209 = dma.done [#allocation4], %s208
        $region68: #{dilated_lstm_sequence.1} parent=31
          #allocation6 [shape = 's32[1]{0}', space=sflag, size = 0x4, scoped, tag = 'scoped memory for dilated_lstm_sequence.1']
          %p211 = scmp.lt.u32.totalorder 24, 8
          %p212 = pneg %p211
          // Predicated region
          $region69: #{dilated_lstm_sequence.1} parent=68 // pred_check
            _
          $region70: #{dilated_lstm_sequence.1} parent=68 // pred_check_branch
            %214 = sbr.rel (%p211) target = $region72
          $region71: #{dilated_lstm_sequence.1} parent=68 // pred_region
            %s229 = sand.u32 24, 7
            %p230 = scmp.eq.s32.totalorder %s229, 0
            // Predicated region
            $region84: #{dilated_lstm_sequence.1} parent=71 // pred_check
              %p231 = pneg %p230
            $region85: #{dilated_lstm_sequence.1} parent=71 // pred_check_branch
              %233 = sbr.rel (%p231) target = $region87
            $region86: #{dilated_lstm_sequence.1} parent=71 // pred_region
              loop: start=0, step=1, limit=1
              $region88: #{dilated_lstm_sequence.1} parent=86 // loop_pre_header
                _
              $region89: #{dilated_lstm_sequence.1} parent=86 // loop_header
                %s235 = sphi 0, %s239
                %p236 = scmp.ge.s32.totalorder %s235, 1
                %s240 = sphi %s3, %s3
                %s241 = sphi [#allocation3], [#allocation3]
              $region90: #{dilated_lstm_sequence.1} parent=86 // loop_header_branch
                %238 = sbr.rel (%p236) target = $region94
              $region91: #{dilated_lstm_sequence.1} parent=86 // loop_body
                %v242 = vld [vmem:[%s240] sm:$0xff]
                %243 = vst [vmem:[%s241] sm:$0xff] %v242
                %v244 = vld [vmem:[%s240 + $0x8] sm:$0xff]
                %245 = vst [vmem:[%s241 + $0x8] sm:$0xff] %v244
                %v246 = vld [vmem:[%s240 + $0x10] sm:$0xff]
                %247 = vst [vmem:[%s241 + $0x10] sm:$0xff] %v246
              $region92: #{dilated_lstm_sequence.1} parent=86 // loop_footer
                %s239 = sadd.s32 1, %s235
              $region93: #{dilated_lstm_sequence.1} parent=86 // loop_footer_branch
                %234 = sbr.rel target = $region89
              $region94: #{dilated_lstm_sequence.1} parent=86 // loop_exit
                _
            $region87: #{dilated_lstm_sequence.1} parent=71 // pred_fallthru
              _
            %p248 = pneg %p230
            // Predicated region
            $region95: #{dilated_lstm_sequence.1} parent=71 // pred_check
              _
            $region96: #{dilated_lstm_sequence.1} parent=71 // pred_check_branch
              %250 = sbr.rel (%p230) target = $region98
            $region97: #{dilated_lstm_sequence.1} parent=71 // pred_region
              %s251 = sand.u32 24, 7
            $region98: #{dilated_lstm_sequence.1} parent=71 // pred_fallthru
              _
          $region72: #{dilated_lstm_sequence.1} parent=68 // pred_fallthru
            _
          // Predicated region
          $region73: #{dilated_lstm_sequence.1} parent=68 // pred_check
            %p215 = pneg %p211
          $region74: #{dilated_lstm_sequence.1} parent=68 // pred_check_branch
            %217 = sbr.rel (%p215) target = $region76
          $region75: #{dilated_lstm_sequence.1} parent=68 // pred_region
            %s218 = sshllo.u32 0, 24
            loop: start=0, step=1, limit=1
            $region77: #{dilated_lstm_sequence.1} parent=75 // loop_pre_header
              _
            $region78: #{dilated_lstm_sequence.1} parent=75 // loop_header
              %s220 = sphi 0, %s224
              %p221 = scmp.ge.s32.totalorder %s220, 1
              %s225 = sphi %s3, %s3
              %s226 = sphi [#allocation3], [#allocation3]
            $region79: #{dilated_lstm_sequence.1} parent=75 // loop_header_branch
              %223 = sbr.rel (%p221) target = $region83
            $region80: #{dilated_lstm_sequence.1} parent=75 // loop_body
              %v227 = vld [vmem:[%s225] sm:%s218]
              %228 = vst [vmem:[%s226] sm:%s218] %v227
            $region81: #{dilated_lstm_sequence.1} parent=75 // loop_footer
              %s224 = sadd.s32 1, %s220
            $region82: #{dilated_lstm_sequence.1} parent=75 // loop_footer_branch
              %219 = sbr.rel target = $region78
            $region83: #{dilated_lstm_sequence.1} parent=75 // loop_exit
              _
          $region76: #{dilated_lstm_sequence.1} parent=68 // pred_fallthru
            _
          // Predicated region
          $region99: #{dilated_lstm_sequence.1} parent=68 // pred_check
            _
          $region100: #{dilated_lstm_sequence.1} parent=68 // pred_check_branch
            %254 = sbr.rel (0) target = $region102
          $region101: #{dilated_lstm_sequence.1} parent=68 // pred_region
            %255 = vsyncadd [#allocation6], 384
          $region102: #{dilated_lstm_sequence.1} parent=68 // pred_fallthru
            _
          %s256 = smul.u32 3, 8
          %s257 = smul.u32 %s256, 1
          %s258 = sshll.u32 %s257, 4
          %259 = dma.done [#allocation6], %s258
      $region32: #{dilated_lstm_sequence.1} parent=27 // pred_fallthru
        _
      %v260 = vld [vmem:[#allocation2] sm:$0xff]
      %v261 = vld [vmem:[#allocation2 + $0x8] sm:$0xff]
      %v262 = vld [vmem:[#allocation2 + $0x10] sm:$0xff]
      %v263 = vpack.c.bf16 %v261, %v260
      %v264 = vpack.c.bf16 %v262, %v262
      %v265 = vld [vmem:[%s1] sm:$0xff]
      %v266 = vld [vmem:[%s1 + $0x8] sm:$0xff]
      %v267 = vld [vmem:[%s1 + $0x10] sm:$0xff]
      %v268 = vld [vmem:[%s1 + $0x18] sm:$0xff]
      %v269 = vld [vmem:[%s1 + $0x20] sm:$0xff]
      %v270 = vld [vmem:[%s1 + $0x28] sm:$0xff]
      %v271 = vld [vmem:[%s1 + $0x30] sm:$0xff]
      %v272 = vld [vmem:[%s1 + $0x38] sm:$0xff]
      %v273 = vld [vmem:[%s1 + $0x40] sm:$0xff]
      %v274 = vld [vmem:[%s1 + $0x48] sm:$0xff]
      %v275 = vld [vmem:[%s1 + $0x50] sm:$0xff]
      %v276 = vld [vmem:[%s1 + $0x58] sm:$0xff]
      %v277 = vld [vmem:[%s1 + $0x60] sm:$0xff]
      %v278 = vld [vmem:[%s1 + $0x68] sm:$0xff]
      %v279 = vld [vmem:[%s1 + $0x70] sm:$0xff]
      %v280 = vld [vmem:[%s1 + $0x78] sm:$0xff]
      %v281 = vld [vmem:[%s1 + $0x80] sm:$0xff]
      %v282 = vld [vmem:[%s1 + $0x88] sm:$0xff]
      %v283 = vld [vmem:[%s1 + $0x90] sm:$0xff]
      %v284 = vld [vmem:[%s1 + $0x98] sm:$0xff]
      %v285 = vld [vmem:[%s1 + $0xa0] sm:$0xff]
      %v286 = vld [vmem:[%s1 + $0xa8] sm:$0xff]
      %v287 = vld [vmem:[%s1 + $0xb0] sm:$0xff]
      %v288 = vld [vmem:[%s1 + $0xb8] sm:$0xff]
      %v289 = vld [vmem:[%s1 + $0xc0] sm:$0xff]
      %v290 = vld [vmem:[%s1 + $0xc8] sm:$0xff]
      %v291 = vld [vmem:[%s1 + $0xd0] sm:$0xff]
      %v292 = vld [vmem:[%s1 + $0xd8] sm:$0xff]
      %v293 = vld [vmem:[%s1 + $0xe0] sm:$0xff]
      %v294 = vld [vmem:[%s1 + $0xe8] sm:$0xff]
      %v295 = vld [vmem:[%s1 + $0xf0] sm:$0xff]
      %v296 = vld [vmem:[%s1 + $0xf8] sm:$0xff]
      %v329 = vunpack.c.l.b16 %v265
      %v330 = vunpack.c.h.b16 %v265
      %v331 = vunpack.c.l.b16 %v266
      %v332 = vunpack.c.h.b16 %v266
      %v333 = vunpack.c.l.b16 %v267
      %v334 = vunpack.c.h.b16 %v267
      %v335 = vunpack.c.l.b16 %v268
      %v336 = vunpack.c.h.b16 %v268
      %v337 = vunpack.c.l.b16 %v269
      %v338 = vunpack.c.h.b16 %v269
      %v339 = vunpack.c.l.b16 %v270
      %v340 = vunpack.c.h.b16 %v270
      %v341 = vunpack.c.l.b16 %v271
      %v342 = vunpack.c.h.b16 %v271
      %v343 = vunpack.c.l.b16 %v272
      %v344 = vunpack.c.h.b16 %v272
      %v345 = vunpack.c.l.b16 %v273
      %v346 = vunpack.c.h.b16 %v273
      %v347 = vunpack.c.l.b16 %v274
      %v348 = vunpack.c.h.b16 %v274
      %v349 = vunpack.c.l.b16 %v275
      %v350 = vunpack.c.h.b16 %v275
      %v351 = vunpack.c.l.b16 %v276
      %v352 = vunpack.c.h.b16 %v276
      %v353 = vunpack.c.l.b16 %v277
      %v354 = vunpack.c.h.b16 %v277
      %v355 = vunpack.c.l.b16 %v278
      %v356 = vunpack.c.h.b16 %v278
      %v357 = vunpack.c.l.b16 %v279
      %v358 = vunpack.c.h.b16 %v279
      %v359 = vunpack.c.l.b16 %v280
      %v360 = vunpack.c.h.b16 %v280
      %v361 = vunpack.c.l.b16 %v281
      %v362 = vunpack.c.h.b16 %v281
      %v363 = vunpack.c.l.b16 %v282
      %v364 = vunpack.c.h.b16 %v282
      %v365 = vunpack.c.l.b16 %v283
      %v366 = vunpack.c.h.b16 %v283
      %v367 = vunpack.c.l.b16 %v284
      %v368 = vunpack.c.h.b16 %v284
      %v369 = vunpack.c.l.b16 %v285
      %v370 = vunpack.c.h.b16 %v285
      %v371 = vunpack.c.l.b16 %v286
      %v372 = vunpack.c.h.b16 %v286
      %v373 = vunpack.c.l.b16 %v287
      %v374 = vunpack.c.h.b16 %v287
      %v375 = vunpack.c.l.b16 %v288
      %v376 = vunpack.c.h.b16 %v288
      %v377 = vunpack.c.l.b16 %v289
      %v378 = vunpack.c.h.b16 %v289
      %v379 = vunpack.c.l.b16 %v290
      %v380 = vunpack.c.h.b16 %v290
      %v381 = vunpack.c.l.b16 %v291
      %v382 = vunpack.c.h.b16 %v291
      %v383 = vunpack.c.l.b16 %v292
      %v384 = vunpack.c.h.b16 %v292
      %v385 = vunpack.c.l.b16 %v293
      %v386 = vunpack.c.h.b16 %v293
      %v387 = vunpack.c.l.b16 %v294
      %v388 = vunpack.c.h.b16 %v294
      %v389 = vunpack.c.l.b16 %v295
      %v390 = vunpack.c.h.b16 %v295
      %v391 = vunpack.c.l.b16 %v296
      %v392 = vunpack.c.h.b16 %v296
      %v393 = vpack.c.b16 %v333, %v329
      %v394 = vpack.c.b16 %v334, %v330
      %v395 = vpack.c.b16 %v335, %v331
      %v396 = vpack.c.b16 %v336, %v332
      %v397 = vpack.c.b16 %v341, %v337
      %v398 = vpack.c.b16 %v342, %v338
      %v399 = vpack.c.b16 %v343, %v339
      %v400 = vpack.c.b16 %v344, %v340
      %v401 = vpack.c.b16 %v349, %v345
      %v402 = vpack.c.b16 %v350, %v346
      %v403 = vpack.c.b16 %v351, %v347
      %v404 = vpack.c.b16 %v352, %v348
      %v405 = vpack.c.b16 %v357, %v353
      %v406 = vpack.c.b16 %v358, %v354
      %v407 = vpack.c.b16 %v359, %v355
      %v408 = vpack.c.b16 %v360, %v356
      %v409 = vpack.c.b16 %v365, %v361
      %v410 = vpack.c.b16 %v366, %v362
      %v411 = vpack.c.b16 %v367, %v363
      %v412 = vpack.c.b16 %v368, %v364
      %v413 = vpack.c.b16 %v373, %v369
      %v414 = vpack.c.b16 %v374, %v370
      %v415 = vpack.c.b16 %v375, %v371
      %v416 = vpack.c.b16 %v376, %v372
      %v417 = vpack.c.b16 %v381, %v377
      %v418 = vpack.c.b16 %v382, %v378
      %v419 = vpack.c.b16 %v383, %v379
      %v420 = vpack.c.b16 %v384, %v380
      %v421 = vpack.c.b16 %v389, %v385
      %v422 = vpack.c.b16 %v390, %v386
      %v423 = vpack.c.b16 %v391, %v387
      %v424 = vpack.c.b16 %v392, %v388
      %457 = vmatprep.subr.bf16.mxu0 %v394
      %458 = vmatpush1.bf16.msra.mxu0 %v393
      %459 = vmatprep.subr.bf16.mxu0 %v398
      %460 = vmatpush1.bf16.msra.mxu0 %v397
      %461 = vmatprep.subr.bf16.mxu0 %v402
      %462 = vmatpush1.bf16.msra.mxu0 %v401
      %463 = vmatprep.subr.bf16.mxu0 %v406
      %464 = vmatpush1.bf16.msra.mxu0 %v405
      %465 = vmatprep.subr.bf16.mxu0 %v410
      %466 = vmatpush1.bf16.msra.mxu0 %v409
      %467 = vmatprep.subr.bf16.mxu0 %v414
      %468 = vmatpush1.bf16.msra.mxu0 %v413
      %469 = vmatprep.subr.bf16.mxu0 %v418
      %470 = vmatpush1.bf16.msra.mxu0 %v417
      %471 = vmatprep.subr.bf16.mxu0 %v422
      %472 = vmatpush1.bf16.msra.mxu0 %v421
      %473 = vmatprep.subr.bf16.mxu0 0
      %474 = vmatpush1.bf16.msra.mxu0 0
      %475 = vmatprep.subr.bf16.mxu0 0
      %476 = vmatpush1.bf16.msra.mxu0 0
      %477 = vmatprep.subr.bf16.mxu0 0
      %478 = vmatpush1.bf16.msra.mxu0 0
      %479 = vmatprep.subr.bf16.mxu0 0
      %480 = vmatpush1.bf16.msra.mxu0 0
      %481 = vmatprep.subr.bf16.mxu0 0
      %482 = vmatpush1.bf16.msra.mxu0 0
      %483 = vmatprep.subr.bf16.mxu0 0
      %484 = vmatpush1.bf16.msra.mxu0 0
      %485 = vmatprep.subr.bf16.mxu0 0
      %486 = vmatpush1.bf16.msra.mxu0 0
      %487 = vmatprep.subr.bf16.mxu0 0
      %488 = vmatpush1.bf16.msra.mxu0 0
      %489 = vmatprep.mubr.bf16.mxu0 0
      %490 = vmatmul.mubr.bf16.gmra.mrb[0].mxu0 %v263
      %v491 = vpop.f32.mrb[0].mxu0
      %v492 = vadd.f32 0.0, %v491
      %v493 = vpop.f32.mrb[0].mxu0
      %v494 = vadd.f32 0.0, %v493
      %v495 = vpop.f32.mrb[0].mxu0
      %v496 = vadd.f32 0.0, %v495
      %v497 = vpop.f32.mrb[0].mxu0
      %v498 = vadd.f32 0.0, %v497
      %499 = vmatprep.mubr.bf16.mxu0 0
      %500 = vmatmul.mubr.bf16.gmra.mrb[0].mxu0 %v264
      %v501 = vpop.f32.mrb[0].mxu0
      %v502 = vadd.f32 0.0, %v501
      %v503 = vpop.f32.mrb[0].mxu0
      %v504 = vadd.f32 0.0, %v503
      %v505 = vpop.f32.mrb[0].mxu0
      %v506 = vpop.f32.mrb[0].mxu0
      %507 = vdwg.mxu0
      %508 = vmatprep.subr.bf16.mxu0 %v396
      %509 = vmatpush1.bf16.msra.mxu0 %v395
      %510 = vmatprep.subr.bf16.mxu0 %v400
      %511 = vmatpush1.bf16.msra.mxu0 %v399
      %512 = vmatprep.subr.bf16.mxu0 %v404
      %513 = vmatpush1.bf16.msra.mxu0 %v403
      %514 = vmatprep.subr.bf16.mxu0 %v408
      %515 = vmatpush1.bf16.msra.mxu0 %v407
      %516 = vmatprep.subr.bf16.mxu0 %v412
      %517 = vmatpush1.bf16.msra.mxu0 %v411
      %518 = vmatprep.subr.bf16.mxu0 %v416
      %519 = vmatpush1.bf16.msra.mxu0 %v415
      %520 = vmatprep.subr.bf16.mxu0 %v420
      %521 = vmatpush1.bf16.msra.mxu0 %v419
      %522 = vmatprep.subr.bf16.mxu0 %v424
      %523 = vmatpush1.bf16.msra.mxu0 %v423
      %524 = vmatprep.subr.bf16.mxu0 0
      %525 = vmatpush1.bf16.msra.mxu0 0
      %526 = vmatprep.subr.bf16.mxu0 0
      %527 = vmatpush1.bf16.msra.mxu0 0
      %528 = vmatprep.subr.bf16.mxu0 0
      %529 = vmatpush1.bf16.msra.mxu0 0
      %530 = vmatprep.subr.bf16.mxu0 0
      %531 = vmatpush1.bf16.msra.mxu0 0
      %532 = vmatprep.subr.bf16.mxu0 0
      %533 = vmatpush1.bf16.msra.mxu0 0
      %534 = vmatprep.subr.bf16.mxu0 0
      %535 = vmatpush1.bf16.msra.mxu0 0
      %536 = vmatprep.subr.bf16.mxu0 0
      %537 = vmatpush1.bf16.msra.mxu0 0
      %538 = vmatprep.subr.bf16.mxu0 0
      %539 = vmatpush1.bf16.msra.mxu0 0
      %540 = vmatprep.mubr.bf16.mxu0 0
      %541 = vmatmul.mubr.bf16.gmra.mrb[0].mxu0 %v263
      %v542 = vpop.f32.mrb[0].mxu0
      %v543 = vadd.f32 0.0, %v542
      %v544 = vpop.f32.mrb[0].mxu0
      %v545 = vadd.f32 0.0, %v544
      %v546 = vpop.f32.mrb[0].mxu0
      %v547 = vadd.f32 0.0, %v546
      %v548 = vpop.f32.mrb[0].mxu0
      %v549 = vadd.f32 0.0, %v548
      %550 = vmatprep.mubr.bf16.mxu0 0
      %551 = vmatmul.mubr.bf16.gmra.mrb[0].mxu0 %v264
      %v552 = vpop.f32.mrb[0].mxu0
      %v553 = vadd.f32 0.0, %v552
      %v554 = vpop.f32.mrb[0].mxu0
      %v555 = vadd.f32 0.0, %v554
      %v556 = vpop.f32.mrb[0].mxu0
      %v557 = vpop.f32.mrb[0].mxu0
      %558 = vdwg.mxu0
      %v559 = vld [vmem:[%s147] sm:$0xff]
      %v560 = vld [vmem:[%s147 + $0x8] sm:$0xff]
      %v561 = vld [vmem:[%s147 + $0x10] sm:$0xff]
      %v562 = vld [vmem:[%s147 + $0x18] sm:$0xff]
      %v563 = vadd.f32 %v559, %v492
      %v564 = vadd.f32 %v560, %v494
      %v565 = vadd.f32 %v561, %v543
      %v566 = vadd.f32 %v562, %v545
      %v567 = vxor.u32 %v563, 2147483648
      %v568 = vmul.f32 %v567, 1.442695
      %v569 = vpow.pop %v568
      %v570 = vadd.f32 %v569, 1.0
      %v571 = vrcp.pop %v570
      %v572 = vmul.f32 1.0, %v571
      %v573 = vxor.u32 %v564, 2147483648
      %v574 = vmul.f32 %v573, 1.442695
      %v575 = vpow.pop %v574
      %v576 = vadd.f32 %v575, 1.0
      %v577 = vrcp.pop %v576
      %v578 = vmul.f32 1.0, %v577
      %v579 = vtanh.pop %v565
      %v580 = vxor.u32 %v566, 2147483648
      %v581 = vmul.f32 %v580, 1.442695
      %v582 = vpow.pop %v581
      %v583 = vadd.f32 %v582, 1.0
      %v584 = vrcp.pop %v583
      %v585 = vmul.f32 1.0, %v584
      %v586 = vld [vmem:[#allocation3] sm:$0xff]
      %v587 = vmul.f32 %v578, %v586
      %v588 = vmul.f32 %v572, %v579
      %v589 = vadd.f32 %v587, %v588
      %v590 = vtanh.pop %v589
      %v591 = vmul.f32 %v585, %v590
      %592 = vst [vmem:[#allocation2] sm:$0xff] %v591
      %593 = vst [vmem:[#allocation3] sm:$0xff] %v589
      %594 = vst [vmem:[%s153] sm:$0xff] %v591
      %s595 = scalar_lea.vmem %s147, 32
      %v596 = vld [vmem:[%s595] sm:$0xff]
      %v597 = vld [vmem:[%s595 + $0x8] sm:$0xff]
      %v598 = vld [vmem:[%s595 + $0x10] sm:$0xff]
      %v599 = vld [vmem:[%s595 + $0x18] sm:$0xff]
      %v600 = vadd.f32 %v596, %v496
      %v601 = vadd.f32 %v597, %v498
      %v602 = vadd.f32 %v598, %v547
      %v603 = vadd.f32 %v599, %v549
      %v604 = vxor.u32 %v600, 2147483648
      %v605 = vmul.f32 %v604, 1.442695
      %v606 = vpow.pop %v605
      %v607 = vadd.f32 %v606, 1.0
      %v608 = vrcp.pop %v607
      %v609 = vmul.f32 1.0, %v608
      %v610 = vxor.u32 %v601, 2147483648
      %v611 = vmul.f32 %v610, 1.442695
      %v612 = vpow.pop %v611
      %v613 = vadd.f32 %v612, 1.0
      %v614 = vrcp.pop %v613
      %v615 = vmul.f32 1.0, %v614
      %v616 = vtanh.pop %v602
      %v617 = vxor.u32 %v603, 2147483648
      %v618 = vmul.f32 %v617, 1.442695
      %v619 = vpow.pop %v618
      %v620 = vadd.f32 %v619, 1.0
      %v621 = vrcp.pop %v620
      %v622 = vmul.f32 1.0, %v621
      %s623 = scalar_lea.vmem [#allocation3], 8
      %v624 = vld [vmem:[%s623] sm:$0xff]
      %v625 = vmul.f32 %v615, %v624
      %v626 = vmul.f32 %v609, %v616
      %v627 = vadd.f32 %v625, %v626
      %v628 = vtanh.pop %v627
      %v629 = vmul.f32 %v622, %v628
      %s630 = scalar_lea.vmem [#allocation2], 8
      %631 = vst [vmem:[%s630] sm:$0xff] %v629
      %632 = vst [vmem:[%s623] sm:$0xff] %v627
      %s633 = scalar_lea.vmem %s153, 8
      %634 = vst [vmem:[%s633] sm:$0xff] %v629
      %s635 = scalar_lea.vmem %s147, 64
      %v636 = vld [vmem:[%s635] sm:$0xff]
      %v637 = vld [vmem:[%s635 + $0x8] sm:$0xff]
      %v638 = vld [vmem:[%s635 + $0x10] sm:$0xff]
      %v639 = vld [vmem:[%s635 + $0x18] sm:$0xff]
      %v640 = vadd.f32 %v636, %v502
      %v641 = vadd.f32 %v637, %v504
      %v642 = vadd.f32 %v638, %v553
      %v643 = vadd.f32 %v639, %v555
      %v644 = vxor.u32 %v640, 2147483648
      %v645 = vmul.f32 %v644, 1.442695
      %v646 = vpow.pop %v645
      %v647 = vadd.f32 %v646, 1.0
      %v648 = vrcp.pop %v647
      %v649 = vmul.f32 1.0, %v648
      %v650 = vxor.u32 %v641, 2147483648
      %v651 = vmul.f32 %v650, 1.442695
      %v652 = vpow.pop %v651
      %v653 = vadd.f32 %v652, 1.0
      %v654 = vrcp.pop %v653
      %v655 = vmul.f32 1.0, %v654
      %v656 = vtanh.pop %v642
      %v657 = vxor.u32 %v643, 2147483648
      %v658 = vmul.f32 %v657, 1.442695
      %v659 = vpow.pop %v658
      %v660 = vadd.f32 %v659, 1.0
      %v661 = vrcp.pop %v660
      %v662 = vmul.f32 1.0, %v661
      %s663 = scalar_lea.vmem [#allocation3], 16
      %v664 = vld [vmem:[%s663] sm:$0xff]
      %v665 = vmul.f32 %v655, %v664
      %v666 = vmul.f32 %v649, %v656
      %v667 = vadd.f32 %v665, %v666
      %v668 = vtanh.pop %v667
      %v669 = vmul.f32 %v662, %v668
      %p670 = scmp.lt.s32.totalorder %s18, 2
      // Predicated region
      $region103: #{dilated_lstm_sequence.1} parent=27 // pred_check
        %p671 = pneg %p670
      $region104: #{dilated_lstm_sequence.1} parent=27 // pred_check_branch
        %673 = sbr.rel (%p671) target = $region106
      $region105: #{dilated_lstm_sequence.1} parent=27 // pred_region
        %s674 = scalar_lea.vmem [#allocation2], 16
        %675 = vst [vmem:[%s674] sm:$0xff] %v669
        %676 = vst [vmem:[%s663] sm:$0xff] %v667
        %s677 = scalar_lea.vmem %s153, 16
        %678 = vst [vmem:[%s677] sm:$0xff] %v669
      $region106: #{dilated_lstm_sequence.1} parent=27 // pred_fallthru
        _
      %p679 = scmp.eq.s32.totalorder %s18, 2
      // Predicated region
      $region107: #{dilated_lstm_sequence.1} parent=27 // pred_check
        %p680 = pneg %p679
      $region108: #{dilated_lstm_sequence.1} parent=27 // pred_check_branch
        %682 = sbr.rel (%p680) target = $region110
      $region109: #{dilated_lstm_sequence.1} parent=27 // pred_region
        $region111: #{dilated_lstm_sequence.1} parent=109
          #allocation8 [shape = 's32[1]{0}', space=sflag, size = 0x4, scoped, tag = 'scoped memory for dilated_lstm_sequence.1']
          %p684 = scmp.lt.u32.totalorder 24, 8
          %p685 = pneg %p684
          // Predicated region
          $region112: #{dilated_lstm_sequence.1} parent=111 // pred_check
            _
          $region113: #{dilated_lstm_sequence.1} parent=111 // pred_check_branch
            %687 = sbr.rel (%p684) target = $region115
          $region114: #{dilated_lstm_sequence.1} parent=111 // pred_region
            %s702 = sand.u32 24, 7
            %p703 = scmp.eq.s32.totalorder %s702, 0
            // Predicated region
            $region127: #{dilated_lstm_sequence.1} parent=114 // pred_check
              %p704 = pneg %p703
            $region128: #{dilated_lstm_sequence.1} parent=114 // pred_check_branch
              %706 = sbr.rel (%p704) target = $region130
            $region129: #{dilated_lstm_sequence.1} parent=114 // pred_region
              loop: start=0, step=1, limit=1
              $region131: #{dilated_lstm_sequence.1} parent=129 // loop_pre_header
                _
              $region132: #{dilated_lstm_sequence.1} parent=129 // loop_header
                %s708 = sphi 0, %s712
                %p709 = scmp.ge.s32.totalorder %s708, 1
                %s713 = sphi [#allocation2], [#allocation2]
                %s714 = sphi %s5, %s5
              $region133: #{dilated_lstm_sequence.1} parent=129 // loop_header_branch
                %711 = sbr.rel (%p709) target = $region137
              $region134: #{dilated_lstm_sequence.1} parent=129 // loop_body
                %v715 = vld [vmem:[%s713] sm:$0xff]
                %716 = vst [vmem:[%s714] sm:$0xff] %v715
                %v717 = vld [vmem:[%s713 + $0x8] sm:$0xff]
                %718 = vst [vmem:[%s714 + $0x8] sm:$0xff] %v717
                %v719 = vld [vmem:[%s713 + $0x10] sm:$0xff]
                %720 = vst [vmem:[%s714 + $0x10] sm:$0xff] %v719
              $region135: #{dilated_lstm_sequence.1} parent=129 // loop_footer
                %s712 = sadd.s32 1, %s708
              $region136: #{dilated_lstm_sequence.1} parent=129 // loop_footer_branch
                %707 = sbr.rel target = $region132
              $region137: #{dilated_lstm_sequence.1} parent=129 // loop_exit
                _
            $region130: #{dilated_lstm_sequence.1} parent=114 // pred_fallthru
              _
            %p721 = pneg %p703
            // Predicated region
            $region138: #{dilated_lstm_sequence.1} parent=114 // pred_check
              _
            $region139: #{dilated_lstm_sequence.1} parent=114 // pred_check_branch
              %723 = sbr.rel (%p703) target = $region141
            $region140: #{dilated_lstm_sequence.1} parent=114 // pred_region
              %s724 = sand.u32 24, 7
            $region141: #{dilated_lstm_sequence.1} parent=114 // pred_fallthru
              _
          $region115: #{dilated_lstm_sequence.1} parent=111 // pred_fallthru
            _
          // Predicated region
          $region116: #{dilated_lstm_sequence.1} parent=111 // pred_check
            %p688 = pneg %p684
          $region117: #{dilated_lstm_sequence.1} parent=111 // pred_check_branch
            %690 = sbr.rel (%p688) target = $region119
          $region118: #{dilated_lstm_sequence.1} parent=111 // pred_region
            %s691 = sshllo.u32 0, 24
            loop: start=0, step=1, limit=1
            $region120: #{dilated_lstm_sequence.1} parent=118 // loop_pre_header
              _
            $region121: #{dilated_lstm_sequence.1} parent=118 // loop_header
              %s693 = sphi 0, %s697
              %p694 = scmp.ge.s32.totalorder %s693, 1
              %s698 = sphi [#allocation2], [#allocation2]
              %s699 = sphi %s5, %s5
            $region122: #{dilated_lstm_sequence.1} parent=118 // loop_header_branch
              %696 = sbr.rel (%p694) target = $region126
            $region123: #{dilated_lstm_sequence.1} parent=118 // loop_body
              %v700 = vld [vmem:[%s698] sm:%s691]
              %701 = vst [vmem:[%s699] sm:%s691] %v700
            $region124: #{dilated_lstm_sequence.1} parent=118 // loop_footer
              %s697 = sadd.s32 1, %s693
            $region125: #{dilated_lstm_sequence.1} parent=118 // loop_footer_branch
              %692 = sbr.rel target = $region121
            $region126: #{dilated_lstm_sequence.1} parent=118 // loop_exit
              _
          $region119: #{dilated_lstm_sequence.1} parent=111 // pred_fallthru
            _
          // Predicated region
          $region142: #{dilated_lstm_sequence.1} parent=111 // pred_check
            _
          $region143: #{dilated_lstm_sequence.1} parent=111 // pred_check_branch
            %727 = sbr.rel (0) target = $region145
          $region144: #{dilated_lstm_sequence.1} parent=111 // pred_region
            %728 = vsyncadd [#allocation8], 384
          $region145: #{dilated_lstm_sequence.1} parent=111 // pred_fallthru
            _
          %s729 = smul.u32 3, 8
          %s730 = smul.u32 %s729, 1
          %s731 = sshll.u32 %s730, 4
          %732 = dma.done [#allocation8], %s731
        $region146: #{dilated_lstm_sequence.1} parent=109
          #allocation10 [shape = 's32[1]{0}', space=sflag, size = 0x4, scoped, tag = 'scoped memory for dilated_lstm_sequence.1']
          %p734 = scmp.lt.u32.totalorder 24, 8
          %p735 = pneg %p734
          // Predicated region
          $region147: #{dilated_lstm_sequence.1} parent=146 // pred_check
            _
          $region148: #{dilated_lstm_sequence.1} parent=146 // pred_check_branch
            %737 = sbr.rel (%p734) target = $region150
          $region149: #{dilated_lstm_sequence.1} parent=146 // pred_region
            %s752 = sand.u32 24, 7
            %p753 = scmp.eq.s32.totalorder %s752, 0
            // Predicated region
            $region162: #{dilated_lstm_sequence.1} parent=149 // pred_check
              %p754 = pneg %p753
            $region163: #{dilated_lstm_sequence.1} parent=149 // pred_check_branch
              %756 = sbr.rel (%p754) target = $region165
            $region164: #{dilated_lstm_sequence.1} parent=149 // pred_region
              loop: start=0, step=1, limit=1
              $region166: #{dilated_lstm_sequence.1} parent=164 // loop_pre_header
                _
              $region167: #{dilated_lstm_sequence.1} parent=164 // loop_header
                %s758 = sphi 0, %s762
                %p759 = scmp.ge.s32.totalorder %s758, 1
                %s763 = sphi [#allocation3], [#allocation3]
                %s764 = sphi %s6, %s6
              $region168: #{dilated_lstm_sequence.1} parent=164 // loop_header_branch
                %761 = sbr.rel (%p759) target = $region172
              $region169: #{dilated_lstm_sequence.1} parent=164 // loop_body
                %v765 = vld [vmem:[%s763] sm:$0xff]
                %766 = vst [vmem:[%s764] sm:$0xff] %v765
                %v767 = vld [vmem:[%s763 + $0x8] sm:$0xff]
                %768 = vst [vmem:[%s764 + $0x8] sm:$0xff] %v767
                %v769 = vld [vmem:[%s763 + $0x10] sm:$0xff]
                %770 = vst [vmem:[%s764 + $0x10] sm:$0xff] %v769
              $region170: #{dilated_lstm_sequence.1} parent=164 // loop_footer
                %s762 = sadd.s32 1, %s758
              $region171: #{dilated_lstm_sequence.1} parent=164 // loop_footer_branch
                %757 = sbr.rel target = $region167
              $region172: #{dilated_lstm_sequence.1} parent=164 // loop_exit
                _
            $region165: #{dilated_lstm_sequence.1} parent=149 // pred_fallthru
              _
            %p771 = pneg %p753
            // Predicated region
            $region173: #{dilated_lstm_sequence.1} parent=149 // pred_check
              _
            $region174: #{dilated_lstm_sequence.1} parent=149 // pred_check_branch
              %773 = sbr.rel (%p753) target = $region176
            $region175: #{dilated_lstm_sequence.1} parent=149 // pred_region
              %s774 = sand.u32 24, 7
            $region176: #{dilated_lstm_sequence.1} parent=149 // pred_fallthru
              _
          $region150: #{dilated_lstm_sequence.1} parent=146 // pred_fallthru
            _
          // Predicated region
          $region151: #{dilated_lstm_sequence.1} parent=146 // pred_check
            %p738 = pneg %p734
          $region152: #{dilated_lstm_sequence.1} parent=146 // pred_check_branch
            %740 = sbr.rel (%p738) target = $region154
          $region153: #{dilated_lstm_sequence.1} parent=146 // pred_region
            %s741 = sshllo.u32 0, 24
            loop: start=0, step=1, limit=1
            $region155: #{dilated_lstm_sequence.1} parent=153 // loop_pre_header
              _
            $region156: #{dilated_lstm_sequence.1} parent=153 // loop_header
              %s743 = sphi 0, %s747
              %p744 = scmp.ge.s32.totalorder %s743, 1
              %s748 = sphi [#allocation3], [#allocation3]
              %s749 = sphi %s6, %s6
            $region157: #{dilated_lstm_sequence.1} parent=153 // loop_header_branch
              %746 = sbr.rel (%p744) target = $region161
            $region158: #{dilated_lstm_sequence.1} parent=153 // loop_body
              %v750 = vld [vmem:[%s748] sm:%s741]
              %751 = vst [vmem:[%s749] sm:%s741] %v750
            $region159: #{dilated_lstm_sequence.1} parent=153 // loop_footer
              %s747 = sadd.s32 1, %s743
            $region160: #{dilated_lstm_sequence.1} parent=153 // loop_footer_branch
              %742 = sbr.rel target = $region156
            $region161: #{dilated_lstm_sequence.1} parent=153 // loop_exit
              _
          $region154: #{dilated_lstm_sequence.1} parent=146 // pred_fallthru
            _
          // Predicated region
          $region177: #{dilated_lstm_sequence.1} parent=146 // pred_check
            _
          $region178: #{dilated_lstm_sequence.1} parent=146 // pred_check_branch
            %777 = sbr.rel (0) target = $region180
          $region179: #{dilated_lstm_sequence.1} parent=146 // pred_region
            %778 = vsyncadd [#allocation10], 384
          $region180: #{dilated_lstm_sequence.1} parent=146 // pred_fallthru
            _
          %s779 = smul.u32 3, 8
          %s780 = smul.u32 %s779, 1
          %s781 = sshll.u32 %s780, 4
          %782 = dma.done [#allocation10], %s781
      $region110: #{dilated_lstm_sequence.1} parent=27 // pred_fallthru
        _
      %s783 = smul.u32 3, %s18
      %p784 = scmp.lt.s32.totalorder %s783, 8
      %s785 = scalar_select %p784, %s783, 8
      %s786 = smul.addr %s785, 8
      %s787 = scalar_lea.vmem %s4, %s786
      // Predicated region
      $region181: #{dilated_lstm_sequence.1} parent=27 // pred_check
        %p788 = pneg %p83
      $region182: #{dilated_lstm_sequence.1} parent=27 // pred_check_branch
        %790 = sbr.rel (%p788) target = $region184
      $region183: #{dilated_lstm_sequence.1} parent=27 // pred_region
        %s791 = smul.u32 3, %s18
      $region184: #{dilated_lstm_sequence.1} parent=27 // pred_fallthru
        _
    $region28: #{dilated_lstm_sequence.1} parent=5 // pred_fallthru
      _
    %p792 = scmp.le.s32.totalorder 2, %s13
    // Predicated region
    $region185: #{dilated_lstm_sequence.1} parent=5 // pred_check
      %p793 = pneg %p792
    $region186: #{dilated_lstm_sequence.1} parent=5 // pred_check_branch
      %795 = sbr.rel (%p793) target = $region188
    $region187: #{dilated_lstm_sequence.1} parent=5 // pred_region
      %s796 = ssub.s32 %s13, 2
      // Predicated region
      $region189: #{dilated_lstm_sequence.1} parent=187 // pred_check
        %p797 = pneg %p89
      $region190: #{dilated_lstm_sequence.1} parent=187 // pred_check_branch
        %799 = sbr.rel (%p797) target = $region192
      $region191: #{dilated_lstm_sequence.1} parent=187 // pred_region
        %s800 = smul.u32 3, %s19
        %p801 = scmp.lt.s32.totalorder %s800, 8
        %s802 = scalar_select %p801, %s800, 8
        %s803 = smul.addr %s802, 8
        %s804 = scalar_lea.vmem %s4, %s803
      $region192: #{dilated_lstm_sequence.1} parent=187 // pred_fallthru
        _
    $region188: #{dilated_lstm_sequence.1} parent=5 // pred_fallthru
      _
  $region6: #{dilated_lstm_sequence.1} parent=0 // loop_footer
    %s17 = sadd.s32 1, %s13
  $region7: #{dilated_lstm_sequence.1} parent=0 // loop_footer_branch
    %12 = sbr.rel target = $region3
  $region8: #{dilated_lstm_sequence.1} parent=0 // loop_exit
    _

</llo_original>
